<compile_context>
chip_gen: v7x
topology: tpu7x:2x2x1
jax: 0.10.0
libtpu: 0.0.40
codegen_flags: <defaults>
</compile_context>

<pallas_src>
import math
import numpy as np
import jax
import jax.numpy as jnp
from jax import lax
from jax.experimental import pallas as pl
from jax.experimental.pallas import tpu as pltpu


# ----------------------------------------------------------------------------
# helpers
# ----------------------------------------------------------------------------
def _row_tile(rows, max_tile):
    """largest multiple-of-8 divisor of `rows` that is <= max_tile (fallback: rows)."""
    t = (min(rows, max_tile) // 8) * 8
    while t >= 8:
        if rows % t == 0:
            return t
        t -= 8
    return rows


# ----------------------------------------------------------------------------
# Kernel 1: per-point linear (Conv1d k=1, bias=False) tiled over rows,
#           fused with BatchNorm batch-statistics accumulation.
# ----------------------------------------------------------------------------
def _linear_stats_kernel(x_ref, w_ref, y_ref, stats_ref):
    i = pl.program_id(0)
    y = lax.dot_general(x_ref[...], w_ref[...], (((1,), (1,)), ((), ())),
                        preferred_element_type=jnp.float32)            # (TR, d_out)
    y_ref[...] = y

    @pl.when(i == 0)
    def _():
        stats_ref[...] = jnp.zeros_like(stats_ref)

    s = jnp.concatenate([jnp.sum(y, axis=0, keepdims=True),
                         jnp.sum(y * y, axis=0, keepdims=True)], axis=0)  # (2, d_out)
    stats_ref[...] = stats_ref[...] + s


def linear_with_batch_stats(x2d, W, *, max_row_tile=512):
    """y = x @ W.T (PyTorch (out,in) layout) + per-channel [sum; sum_sq]."""
    R, d_in = x2d.shape
    d_out = W.shape[0]
    TR = _row_tile(R, max_row_tile)
    grid = (R // TR,)
    return pl.pallas_call(
        _linear_stats_kernel,
        grid=grid,
        in_specs=[pl.BlockSpec((TR, d_in), lambda i: (i, 0)),
                  pl.BlockSpec((d_out, d_in), lambda i: (0, 0))],
        out_specs=[pl.BlockSpec((TR, d_out), lambda i: (i, 0)),
                   pl.BlockSpec((2, d_out), lambda i: (0, 0))],
        out_shape=(jax.ShapeDtypeStruct((R, d_out), jnp.float32),
                   jax.ShapeDtypeStruct((2, d_out), jnp.float32)),
        compiler_params=pltpu.CompilerParams(
            dimension_semantics=("arbitrary",)),
    )(x2d, W)


def _bn_fold(stats, rows, gamma, beta, eps=1e-5):
    """Fold train-mode BatchNorm (biased variance) into per-channel scale/shift."""
    mean = stats[0] / rows
    var = stats[1] / rows - mean * mean
    scale = gamma * lax.rsqrt(var + eps)
    shift = beta - mean * scale
    return scale, shift


# ----------------------------------------------------------------------------
# Kernel 2: fused three_nn + inverse-distance interpolation + lateral BN/ReLU + add.
#           One (TM, d_out) query tile per grid cell; the full coarse set (N points)
#           for the batch stays VMEM-resident (no gathers, no KxD HBM blowup).
# ----------------------------------------------------------------------------
def _interp_add_kernel(p2_ref, p1t_ref, u_ref, l_ref, bn_ref, out_ref):
    TM = p2_ref.shape[1]
    N = u_ref.shape[1]

    p2t = p2_ref[0]                    # (TM, 3)  fine-point coords
    p1t = p1t_ref[0]                   # (3, N)   coarse-point coords (coord-major)
    bn = bn_ref[...]                   # (4, d_out): [scale_u, shift_u, scale_l, shift_l]

    # BatchNorm(+ReLU) folded into per-channel affine for both branches.
    u = jnp.maximum(u_ref[0] * bn[0:1] + bn[1:2], 0.0)       # (N, d_out) up features
    lat = jnp.maximum(l_ref[0] * bn[2:3] + bn[3:4], 0.0)     # (TM, d_out)

    # pairwise squared distances query -> coarse, per coordinate (VPU only).
    d2 = jnp.zeros((TM, N), jnp.float32)
    for c in range(3):
        diff = p2t[:, c:c + 1] - p1t[c:c + 1, :]
        d2 = d2 + diff * diff

    # three_nn + inverse-distance weights, expressed as a dense (TM, N) weight
    # matrix so three_interpolate becomes one MXU matmul (gather-free).
    # TODO(synk): assumes pt_utils.three_nn returns Euclidean (sqrt'ed) distances,
    # as in pointnet2_ops; selection order is irrelevant for the weighted sum.
    iota_n = lax.broadcasted_iota(jnp.int32, (TM, N), 1)
    w_dense = jnp.zeros((TM, N), jnp.float32)
    recip_sum = jnp.zeros((TM, 1), jnp.float32)
    d2w = d2
    for _ in range(3):
        mn = jnp.min(d2w, axis=1, keepdims=True)                               # (TM,1)
        sel = jnp.min(jnp.where(d2w == mn, iota_n, N), axis=1, keepdims=True)  # first argmin
        onehot = iota_n == sel
        recip = 1.0 / (jnp.sqrt(jnp.maximum(mn, 0.0)) + 1e-8)
        w_dense = w_dense + jnp.where(onehot, recip, 0.0)
        recip_sum = recip_sum + recip
        d2w = jnp.where(onehot, jnp.float32(1e30), d2w)
    w_dense = w_dense / recip_sum

    interp = jnp.dot(w_dense, u, preferred_element_type=jnp.float32)   # (TM, d_out)
    out_ref[0] = interp + lat


def interpolate_add(p2, p1, u_lin, l_lin, bn_slab, *, query_tile=None):
    B, M, _ = p2.shape
    N = p1.shape[1]
    d_out = u_lin.shape[-1]
    TM = query_tile if query_tile is not None else _row_tile(M, 256)
    assert M % TM == 0
    # TODO(synk): for very large coarse sets N the (N, d_out) up-feature slab should
    # be blocked over N with a running top-3 merge instead of full VMEM residency.
    p1t = jnp.transpose(p1, (0, 2, 1))                                 # (B, 3, N)
    grid = (B, M // TM)
    return pl.pallas_call(
        _interp_add_kernel,
        grid=grid,
        in_specs=[pl.BlockSpec((1, TM, 3), lambda b, m: (b, m, 0)),
                  pl.BlockSpec((1, 3, N), lambda b, m: (b, 0, 0)),
                  pl.BlockSpec((1, N, d_out), lambda b, m: (b, 0, 0)),
                  pl.BlockSpec((1, TM, d_out), lambda b, m: (b, m, 0)),
                  pl.BlockSpec((4, d_out), lambda b, m: (0, 0))],
        out_specs=pl.BlockSpec((1, TM, d_out), lambda b, m: (b, m, 0)),
        out_shape=jax.ShapeDtypeStruct((B, M, d_out), jnp.float32),
        compiler_params=pltpu.CompilerParams(
            dimension_semantics=("parallel", "parallel")),
    )(p2, p1t, u_lin, l_lin, bn_slab)


# ----------------------------------------------------------------------------
# Full TransitionUp forward
# ----------------------------------------------------------------------------
def transition_up(x1, p1, x2, p2, params, *, max_row_tile=512, query_tile=None):
    """
    x1: (B, N, d_in)   coarse features        p1: (B, N, 3)
    x2: (B, M, d_out)  fine lateral features  p2: (B, M, 3)     (N < M)
    returns (y: (B, M, d_out), p2)
    """
    Wu, gu, bu, Wl, gl, bl = params
    B, N, d_in = x1.shape
    M = x2.shape[1]
    d_out = Wu.shape[0]

    # up_mlp / lateral_mlp linear parts (Conv1d k=1 == per-point linear), fused
    # with the BatchNorm statistics reduction (two-pass BN).
    u_lin, u_stats = linear_with_batch_stats(x1.reshape(B * N, d_in), Wu,
                                             max_row_tile=max_row_tile)
    l_lin, l_stats = linear_with_batch_stats(x2.reshape(B * M, d_out), Wl,
                                             max_row_tile=max_row_tile)
    su, tu = _bn_fold(u_stats, B * N, gu, bu)
    sl, tl = _bn_fold(l_stats, B * M, gl, bl)
    bn_slab = jnp.stack([su, tu, sl, tl], axis=0)                      # (4, d_out)

    y = interpolate_add(p2, p1,
                        u_lin.reshape(B, N, d_out),
                        l_lin.reshape(B, M, d_out),
                        bn_slab, query_tile=query_tile)
    return y, p2


# ----------------------------------------------------------------------------
# parameter init (fresh-module style)
# ----------------------------------------------------------------------------
def init_params(key, d_in, d_out):
    k1, k2, k3, k4, k5, k6 = jax.random.split(key, 6)
    bu = 1.0 / math.sqrt(d_in)
    Wu = jax.random.uniform(k1, (d_out, d_in), jnp.float32, -bu, bu)
    bl = 1.0 / math.sqrt(d_out)
    Wl = jax.random.uniform(k2, (d_out, d_out), jnp.float32, -bl, bl)
    # slightly perturbed affine params so the BN fold is actually exercised
    gu_ = 1.0 + 0.1 * jax.random.normal(k3, (d_out,), jnp.float32)
    bu_ = 0.1 * jax.random.normal(k4, (d_out,), jnp.float32)
    gl_ = 1.0 + 0.1 * jax.random.normal(k5, (d_out,), jnp.float32)
    bl_ = 0.1 * jax.random.normal(k6, (d_out,), jnp.float32)
    return (Wu, gu_, bu_, Wl, gl_, bl_)


# ----------------------------------------------------------------------------
# pure-JAX reference (numerical check)
# ----------------------------------------------------------------------------
def ref_transition_up(x1, p1, x2, p2, params, eps=1e-5):
    Wu, gu, bu, Wl, gl, bl = params

    def lin_bn_relu(x, W, g, b):
        y = jnp.einsum('bnd,od->bno', x, W)
        yf = y.reshape(-1, y.shape[-1])
        mu = yf.mean(0)
        var = ((yf - mu) ** 2).mean(0)          # biased (BN train forward)
        return jax.nn.relu((y - mu) * lax.rsqrt(var + eps) * g + b)

    u = lin_bn_relu(x1, Wu, gu, bu)             # (B, N, d_out)
    lat = lin_bn_relu(x2, Wl, gl, bl)           # (B, M, d_out)

    d2 = jnp.sum((p2[:, :, None, :] - p1[:, None, :, :]) ** 2, axis=-1)   # (B, M, N)
    negv, idx = lax.top_k(-d2, 3)
    dist = jnp.sqrt(jnp.maximum(-negv, 0.0))
    recip = 1.0 / (dist + 1e-8)
    w = recip / jnp.sum(recip, axis=-1, keepdims=True)                    # (B, M, 3)
    gathered = jax.vmap(lambda uu, ii: uu[ii])(u, idx)                    # (B, M, 3, d_out)
    interp = jnp.sum(w[..., None] * gathered, axis=2)
    return interp + lat, p2


# ----------------------------------------------------------------------------
if __name__ == "__main__":
    # N (coarse) < M (fine); d_out = 128 keeps every output block lane-dense.
    B, N, M, D_IN, D_OUT = 2, 16, 128, 64, 128

    key = jax.random.PRNGKey(0)
    k1, k2, k3, k4, kp = jax.random.split(key, 5)
    x1 = jax.random.normal(k1, (B, N, D_IN), jnp.float32)
    p1 = jax.random.normal(k2, (B, N, 3), jnp.float32)
    x2 = jax.random.normal(k3, (B, M, D_OUT), jnp.float32)
    p2 = jax.random.normal(k4, (B, M, 3), jnp.float32)
    params = init_params(kp, D_IN, D_OUT)

    # small tiles so the multi-step BN reduction and query tiling paths are exercised
    y, p2_out = transition_up(x1, p1, x2, p2, params,
                              max_row_tile=64, query_tile=64)
    jax.block_until_ready((y, p2_out))

    y_ref, _ = ref_transition_up(x1, p1, x2, p2, params)
    assert y.shape == (B, M, D_OUT) and p2_out.shape == (B, M, 3)
    np.testing.assert_allclose(np.asarray(y), np.asarray(y_ref), rtol=1e-3, atol=1e-3)
    np.testing.assert_allclose(np.asarray(p2_out), np.asarray(p2), rtol=0, atol=0)
    print("KERNEL_OK")
</pallas_src>

<mosaic_0001>
module attributes {stable_mosaic.version = 11 : i64} {
  func.func @_linear_stats_kernel(%arg0: i32, %arg1: memref<32x64xf32, #tpu.memory_space<vmem>>, %arg2: memref<128x64xf32, #tpu.memory_space<vmem>>, %arg3: memref<32x128xf32, #tpu.memory_space<vmem>>, %arg4: memref<2x128xf32, #tpu.memory_space<vmem>>) attributes {dimension_semantics = [#tpu.dimension_semantics<arbitrary>], iteration_bounds = array<i64: 1>, scalar_prefetch = 0 : i64, scratch_operands = 0 : i64, tpu.core_type = #tpu.core_type<tc>, window_params = [{transform_indices = @transform_0, window_bounds = array<i64: 32, 64>}, {pipeline_mode = #tpu.pipeline_mode<synchronous>, transform_indices = @transform_1, window_bounds = array<i64: 128, 64>}, {transform_indices = @transform_2, window_bounds = array<i64: 32, 128>}, {pipeline_mode = #tpu.pipeline_mode<synchronous>, transform_indices = @transform_3, window_bounds = array<i64: 2, 128>}]} {
    %c0 = arith.constant 0 : index
    %c0_0 = arith.constant 0 : index
    %0 = vector.load %arg1[%c0, %c0_0] : memref<32x64xf32, #tpu.memory_space<vmem>>, vector<32x64xf32>
    %c0_1 = arith.constant 0 : index
    %c0_2 = arith.constant 0 : index
    %1 = vector.load %arg2[%c0_1, %c0_2] : memref<128x64xf32, #tpu.memory_space<vmem>>, vector<128x64xf32>
    %cst = arith.constant dense<0.000000e+00> : vector<32x128xf32>
    %2 = tpu.matmul %0, %1, %cst {dimension_numbers = #tpu.dot_dimension_numbers<[1], [1], [0], [0], [0, 0, 1, 0], [], []>} : vector<32x64xf32>, vector<128x64xf32>, vector<32x128xf32> -> vector<32x128xf32>
    %c0_3 = arith.constant 0 : index
    %c0_4 = arith.constant 0 : index
    %3 = vector.load %arg3[%c0_3, %c0_4] : memref<32x128xf32, #tpu.memory_space<vmem>>, vector<32x128xf32>
    tpu.vector_store %arg3[%c0_3, %c0_4], %2 {strides = array<i32>} : memref<32x128xf32, #tpu.memory_space<vmem>>, vector<32x128xf32>,
    %c0_i32 = arith.constant 0 : i32
    %4 = arith.cmpi eq, %arg0, %c0_i32 : i32
    %5 = arith.extui %4 : i1 to i32
    %c0_i32_5 = arith.constant 0 : i32
    %6 = arith.cmpi ne, %5, %c0_i32_5 : i32
    scf.if %6 {
      %cst_12 = arith.constant 0.000000e+00 : f32
      %16 = vector.broadcast %cst_12 : f32 to vector<2x128xf32>
      %c0_13 = arith.constant 0 : index
      %c0_14 = arith.constant 0 : index
      %17 = vector.load %arg4[%c0_13, %c0_14] : memref<2x128xf32, #tpu.memory_space<vmem>>, vector<2x128xf32>
      tpu.vector_store %arg4[%c0_13, %c0_14], %16 {strides = array<i32>} : memref<2x128xf32, #tpu.memory_space<vmem>>, vector<2x128xf32>,
    } else {
    }
    %cst_6 = arith.constant dense<0.000000e+00> : vector<128xf32>
    %7 = vector.multi_reduction <add>, %2, %cst_6 [0] : vector<32x128xf32> to vector<128xf32>
    %8 = vector.shape_cast %7 : vector<128xf32> to vector<1x128xf32>
    %9 = arith.mulf %2, %2 : vector<32x128xf32>
    %cst_7 = arith.constant dense<0.000000e+00> : vector<128xf32>
    %10 = vector.multi_reduction <add>, %9, %cst_7 [0] : vector<32x128xf32> to vector<128xf32>
    %11 = vector.shape_cast %10 : vector<128xf32> to vector<1x128xf32>
    %12 = tpu.concatenate %8, %11 in 0 : vector<1x128xf32>, vector<1x128xf32> -> vector<2x128xf32>
    %c0_8 = arith.constant 0 : index
    %c0_9 = arith.constant 0 : index
    %13 = vector.load %arg4[%c0_8, %c0_9] : memref<2x128xf32, #tpu.memory_space<vmem>>, vector<2x128xf32>
    %14 = arith.addf %13, %12 : vector<2x128xf32>
    %c0_10 = arith.constant 0 : index
    %c0_11 = arith.constant 0 : index
    %15 = vector.load %arg4[%c0_10, %c0_11] : memref<2x128xf32, #tpu.memory_space<vmem>>, vector<2x128xf32>
    tpu.vector_store %arg4[%c0_10, %c0_11], %14 {strides = array<i32>} : memref<2x128xf32, #tpu.memory_space<vmem>>, vector<2x128xf32>,
    return
  }
  func.func @transform_0(%arg0: i32) -> (i32, i32) {
    %c0_i32 = arith.constant 0 : i32
    %c0_i32_0 = arith.constant 0 : i32
    return %arg0, %c0_i32 : i32, i32
  }
  func.func @transform_1(%arg0: i32) -> (i32, i32) {
    %c0_i32 = arith.constant 0 : i32
    %c0_i32_0 = arith.constant 0 : i32
    %c0_i32_1 = arith.constant 0 : i32
    return %c0_i32, %c0_i32_0 : i32, i32
  }
  func.func @transform_2(%arg0: i32) -> (i32, i32) {
    %c0_i32 = arith.constant 0 : i32
    %c0_i32_0 = arith.constant 0 : i32
    return %arg0, %c0_i32 : i32, i32
  }
  func.func @transform_3(%arg0: i32) -> (i32, i32) {
    %c0_i32 = arith.constant 0 : i32
    %c0_i32_0 = arith.constant 0 : i32
    %c0_i32_1 = arith.constant 0 : i32
    return %c0_i32, %c0_i32_0 : i32, i32
  }
}

</mosaic_0001>

<llo_original>
// kernel: tpu_custom_call.1
$region0: #{tpu_custom_call.1}
  #allocation0 [shape = 'u32[]', space=smem, size = 0x4, offset = 0x4, fixed_abs, tag = 'smem constant byte address 0x4 - core index']
  #allocation1 [shape = 'u32[144,128]{1,0:T(1,128)}', space=vmem, size = 0x12000, scoped, tag = 'internal scratch']
  %s0 = inlined_call_operand.vmem [shape: f32[32,64], index: 0, kind: input, shape index: {}]
  %s1 = inlined_call_operand.vmem [shape: f32[128,64], index: 1, kind: input, shape index: {}]
  %s2 = inlined_call_operand.hbm [shape: f32[32,128], index: 2, kind: output, shape index: {0}]
  %s3 = inlined_call_operand.hbm [shape: f32[2,128], index: 3, kind: output, shape index: {1}]
  %4 = xla_tuple %s2, %s3
  %s5 = sld [smem:[#allocation0]]
  $region30: #{tpu_custom_call.1} parent=0
    _
  %s7 = ssub.s32 1, %s5
  %s8 = scalar_select 0, %s7, %s5
  $region1: #{tpu_custom_call.1} parent=0
    #allocation2 [shape = 'u8[16384]{0}', space=vmem, size = 0x4000, scoped, tag = 'output window, operand 0, single buffered']
    #allocation3 [shape = 's32[1]{0}', space=sflag, size = 0x4, scoped, tag = 'scoped memory for tpu_custom_call.1']
    #allocation4 [shape = 'u8[1024]{0}', space=vmem, size = 0x400, scoped, tag = 'output window, operand 1, single buffered']
    #allocation5 [shape = 's32[1]{0}', space=sflag, size = 0x4, scoped, tag = 'scoped memory for tpu_custom_call.1']
    %9 = vsyncpa [#allocation3], 0
    %10 = vsyncpa [#allocation5], 0
    // Predicated region
    $region2: #{tpu_custom_call.1} parent=1 // pred_check
      _
    $region3: #{tpu_custom_call.1} parent=1 // pred_check_branch
      %12 = sbr.rel (0) target = $region5
    $region4: #{tpu_custom_call.1} parent=1 // pred_region
      _
    $region5: #{tpu_custom_call.1} parent=1 // pred_fallthru
      _
    // Predicated region
    $region6: #{tpu_custom_call.1} parent=1 // pred_check
      _
    $region7: #{tpu_custom_call.1} parent=1 // pred_check_branch
      %14 = sbr.rel (0) target = $region9
    $region8: #{tpu_custom_call.1} parent=1 // pred_region
      _
    $region9: #{tpu_custom_call.1} parent=1 // pred_fallthru
      _
    %v15 = vld [vmem:[%s0] sm:$0xff]
    %v16 = vld [vmem:[%s0 + $0x8] sm:$0xff]
    %v17 = vld [vmem:[%s0 + $0x10] sm:$0xff]
    %v18 = vld [vmem:[%s0 + $0x18] sm:$0xff]
    %v19 = vld [vmem:[%s1] sm:$0xff]
    %v20 = vld [vmem:[%s1 + $0x8] sm:$0xff]
    %v21 = vld [vmem:[%s1 + $0x10] sm:$0xff]
    %v22 = vld [vmem:[%s1 + $0x18] sm:$0xff]
    %v23 = vld [vmem:[%s1 + $0x20] sm:$0xff]
    %v24 = vld [vmem:[%s1 + $0x28] sm:$0xff]
    %v25 = vld [vmem:[%s1 + $0x30] sm:$0xff]
    %v26 = vld [vmem:[%s1 + $0x38] sm:$0xff]
    %v27 = vld [vmem:[%s1 + $0x40] sm:$0xff]
    %v28 = vld [vmem:[%s1 + $0x48] sm:$0xff]
    %v29 = vld [vmem:[%s1 + $0x50] sm:$0xff]
    %v30 = vld [vmem:[%s1 + $0x58] sm:$0xff]
    %v31 = vld [vmem:[%s1 + $0x60] sm:$0xff]
    %v32 = vld [vmem:[%s1 + $0x68] sm:$0xff]
    %v33 = vld [vmem:[%s1 + $0x70] sm:$0xff]
    %v34 = vld [vmem:[%s1 + $0x78] sm:$0xff]
    %vm35 = vcmask 523264
    %v37 = vsel %vm35, %v15, 0
    %v40 = vsel %vm35, %v16, 0
    %v43 = vsel %vm35, %v17, 0
    %v46 = vsel %vm35, %v18, 0
    %v49 = vsel %vm35, %v19, 0
    %v52 = vsel %vm35, %v20, 0
    %v55 = vsel %vm35, %v21, 0
    %v58 = vsel %vm35, %v22, 0
    %v61 = vsel %vm35, %v23, 0
    %v64 = vsel %vm35, %v24, 0
    %v67 = vsel %vm35, %v25, 0
    %v70 = vsel %vm35, %v26, 0
    %v73 = vsel %vm35, %v27, 0
    %v76 = vsel %vm35, %v28, 0
    %v79 = vsel %vm35, %v29, 0
    %v82 = vsel %vm35, %v30, 0
    %v85 = vsel %vm35, %v31, 0
    %v88 = vsel %vm35, %v32, 0
    %v91 = vsel %vm35, %v33, 0
    %v94 = vsel %vm35, %v34, 0
    %96 = vmatprep.subr.mxu0 0.0
    %97 = vmatpush1.xpose.msra.mxu0 %v49
    %98 = vmatprep.subr.mxu0 0.0
    %99 = vmatpush1.xpose.msra.mxu0 %v52
    %100 = vmatprep.subr.mxu0 0.0
    %101 = vmatpush1.xpose.msra.mxu0 %v55
    %102 = vmatprep.subr.mxu0 0.0
    %103 = vmatpush1.xpose.msra.mxu0 %v58
    %104 = vmatprep.subr.mxu0 0.0
    %105 = vmatpush1.xpose.msra.mxu0 %v61
    %106 = vmatprep.subr.mxu0 0.0
    %107 = vmatpush1.xpose.msra.mxu0 %v64
    %108 = vmatprep.subr.mxu0 0.0
    %109 = vmatpush1.xpose.msra.mxu0 %v67
    %110 = vmatprep.subr.mxu0 0.0
    %111 = vmatpush1.xpose.msra.mxu0 %v70
    %112 = vmatprep.subr.mxu0 0.0
    %113 = vmatpush1.xpose.msra.mxu0 %v73
    %114 = vmatprep.subr.mxu0 0.0
    %115 = vmatpush1.xpose.msra.mxu0 %v76
    %116 = vmatprep.subr.mxu0 0.0
    %117 = vmatpush1.xpose.msra.mxu0 %v79
    %118 = vmatprep.subr.mxu0 0.0
    %119 = vmatpush1.xpose.msra.mxu0 %v82
    %120 = vmatprep.subr.mxu0 0.0
    %121 = vmatpush1.xpose.msra.mxu0 %v85
    %122 = vmatprep.subr.mxu0 0.0
    %123 = vmatpush1.xpose.msra.mxu0 %v88
    %124 = vmatprep.subr.mxu0 0.0
    %125 = vmatpush1.xpose.msra.mxu0 %v91
    %126 = vmatprep.subr.mxu0 0.0
    %127 = vmatpush1.xpose.msra.mxu0 %v94
    %128 = vmatprep.subr.mxu0 0.0
    %129 = vmatpush1.xpose.msra.mxu0 0.0
    %130 = vmatprep.subr.mxu0 0.0
    %131 = vmatpush1.xpose.msra.mxu0 0.0
    %132 = vmatprep.subr.mxu0 0.0
    %133 = vmatpush1.xpose.msra.mxu0 0.0
    %134 = vmatprep.subr.mxu0 0.0
    %135 = vmatpush1.xpose.msra.mxu0 0.0
    %136 = vmatprep.subr.mxu0 0.0
    %137 = vmatpush1.xpose.msra.mxu0 0.0
    %138 = vmatprep.subr.mxu0 0.0
    %139 = vmatpush1.xpose.msra.mxu0 0.0
    %140 = vmatprep.subr.mxu0 0.0
    %141 = vmatpush1.xpose.msra.mxu0 0.0
    %142 = vmatprep.subr.mxu0 0.0
    %143 = vmatpush1.xpose.msra.mxu0 0.0
    %144 = vmatprep.subr.mxu0 0.0
    %145 = vmatpush1.xpose.msra.mxu0 0.0
    %146 = vmatprep.subr.mxu0 0.0
    %147 = vmatpush1.xpose.msra.mxu0 0.0
    %148 = vmatprep.subr.mxu0 0.0
    %149 = vmatpush1.xpose.msra.mxu0 0.0
    %150 = vmatprep.subr.mxu0 0.0
    %151 = vmatpush1.xpose.msra.mxu0 0.0
    %152 = vmatprep.subr.mxu0 0.0
    %153 = vmatpush1.xpose.msra.mxu0 0.0
    %154 = vmatprep.subr.mxu0 0.0
    %155 = vmatpush1.xpose.msra.mxu0 0.0
    %156 = vmatprep.subr.mxu0 0.0
    %157 = vmatpush1.xpose.msra.mxu0 0.0
    %158 = vmatprep.subr.mxu0 0.0
    %159 = vmatpush1.xpose.msra.mxu0 0.0
    %160 = vmatprep.mubr.f32.mxu0 0.0
    %161 = vmatmul.mubr.f32.gmra.mrb[0].mxu0 %v37
    %v162 = vpop.f32.mrb[0].mxu0
    %v163 = vadd.f32 0.0, %v162
    %v164 = vpop.f32.mrb[0].mxu0
    %165 = vmatprep.mubr.f32.mxu0 0.0
    %166 = vmatmul.mubr.f32.gmra.mrb[0].mxu0 %v40
    %v167 = vpop.f32.mrb[0].mxu0
    %v168 = vadd.f32 0.0, %v167
    %v169 = vpop.f32.mrb[0].mxu0
    %170 = vmatprep.mubr.f32.mxu0 0.0
    %171 = vmatmul.mubr.f32.gmra.mrb[0].mxu0 %v43
    %v172 = vpop.f32.mrb[0].mxu0
    %v173 = vadd.f32 0.0, %v172
    %v174 = vpop.f32.mrb[0].mxu0
    %175 = vmatprep.mubr.f32.mxu0 0.0
    %176 = vmatmul.mubr.f32.gmra.mrb[0].mxu0 %v46
    %v177 = vpop.f32.mrb[0].mxu0
    %v178 = vadd.f32 0.0, %v177
    %v179 = vpop.f32.mrb[0].mxu0
    %180 = vdwg.mxu0
    %181 = vst [vmem:[#allocation2] sm:$0xff] %v163
    %182 = vst [vmem:[#allocation2 + $0x8] sm:$0xff] %v168
    %183 = vst [vmem:[#allocation2 + $0x10] sm:$0xff] %v173
    %184 = vst [vmem:[#allocation2 + $0x18] sm:$0xff] %v178
    %p185 = scmp.eq.s32.totalorder 0, 0
    // Predicated region
    $region10: #{tpu_custom_call.1} parent=1 // pred_check
      %p186 = pneg %p185
    $region11: #{tpu_custom_call.1} parent=1 // pred_check_branch
      %188 = sbr.rel (%p186) target = $region13
    $region12: #{tpu_custom_call.1} parent=1 // pred_region
      %189 = vst [vmem:[#allocation4] sm:$0x3] 0.0
    $region13: #{tpu_custom_call.1} parent=1 // pred_fallthru
      _
    %v190 = vadd.f32 %v163, %v168
    %v191 = vadd.f32 %v190, %v173
    %v192 = vadd.f32 %v191, %v178
    %v193 = vrot.slane %v192, 4
    %v194 = vadd.f32 %v192, %v193
    %v195 = vrot.slane %v194, 2
    %v196 = vadd.f32 %v194, %v195
    %v197 = vrot.slane %v196, 1
    %v198 = vadd.f32 %v196, %v197
    %v199 = vmul.f32 %v163, %v163
    %v200 = vmul.f32 %v168, %v168
    %v201 = vmul.f32 %v173, %v173
    %v202 = vmul.f32 %v178, %v178
    %v203 = vadd.f32 %v199, %v200
    %v204 = vadd.f32 %v203, %v201
    %v205 = vadd.f32 %v204, %v202
    %v206 = vrot.slane %v205, 4
    %v207 = vadd.f32 %v205, %v206
    %v208 = vrot.slane %v207, 2
    %v209 = vadd.f32 %v207, %v208
    %v210 = vrot.slane %v209, 1
    %v211 = vadd.f32 %v209, %v210
    %vm212 = vcmask 1040384
    %v213 = vsel %vm212, %v198, %v211
    %v214 = vld [vmem:[#allocation4] sm:$0x3]
    %v215 = vadd.f32 %v214, %v213
    %216 = vst [vmem:[#allocation4] sm:$0x3] %v215
    // Predicated region
    $region14: #{tpu_custom_call.1} parent=1 // pred_check
      _
    $region15: #{tpu_custom_call.1} parent=1 // pred_check_branch
      %218 = sbr.rel (0) target = $region17
    $region16: #{tpu_custom_call.1} parent=1 // pred_region
      %s220 = ssub.s32 512, 512
      %221 = vsyncadd [#allocation3], %s220
      %s222 = sshll.u32 [#allocation2], 4
      %s223 = int_to_ptr.vmem [resolvable:$true] %s222
      %228 = dma.vmem_to_hbm [thread:$0]  %s223, 512, %s2, [#allocation3], 128, 128, 8
    $region17: #{tpu_custom_call.1} parent=1 // pred_fallthru
      _
    // Predicated region
    $region18: #{tpu_custom_call.1} parent=1 // pred_check
      _
    $region19: #{tpu_custom_call.1} parent=1 // pred_check_branch
      %230 = sbr.rel (0) target = $region21
    $region20: #{tpu_custom_call.1} parent=1 // pred_region
      %s232 = ssub.s32 32, 32
      %233 = vsyncadd [#allocation5], %s232
      %s235 = sshll.u32 [#allocation4], 4
      %s236 = int_to_ptr.vmem [resolvable:$true] %s235
      %238 = dma.vmem_to_hbm [thread:$0]  %s236, 32, %s3, [#allocation5]
    $region21: #{tpu_custom_call.1} parent=1 // pred_fallthru
      _
    // Predicated region
    $region22: #{tpu_custom_call.1} parent=1 // pred_check
      _
    $region23: #{tpu_custom_call.1} parent=1 // pred_check_branch
      %240 = sbr.rel (0) target = $region25
    $region24: #{tpu_custom_call.1} parent=1 // pred_region
      %241 = dma.done [#allocation3], 512
    $region25: #{tpu_custom_call.1} parent=1 // pred_fallthru
      _
    // Predicated region
    $region26: #{tpu_custom_call.1} parent=1 // pred_check
      _
    $region27: #{tpu_custom_call.1} parent=1 // pred_check_branch
      %243 = sbr.rel (0) target = $region29
    $region28: #{tpu_custom_call.1} parent=1 // pred_region
      %244 = dma.done [#allocation5], 32
    $region29: #{tpu_custom_call.1} parent=1 // pred_fallthru
      _
    %245 = vsyncpa [#allocation3], 1
    %246 = vsyncpa [#allocation5], 1

</llo_original>
